<compile_context>
chip_gen: v7x
topology: tpu7x:2x2x1
jax: 0.10.0
libtpu: 0.0.40
codegen_flags: <defaults>
</compile_context>

<pallas_src>
import jax
import jax.numpy as jnp
from jax.experimental import pallas as pl
from jax.experimental.pallas import tpu as pltpu

_MAX_INFLIGHT_DMAS = 4                    # concurrent HBM->HBM copies
_CHUNK_THRESHOLD_BYTES = 2 * 1024 * 1024  # below this a single DMA saturates


def _chunk_bounds(shape, dtype):
    """Static (start, size) splits along axis 0 for concurrent DMAs.

    Returns [None] when a single whole-array copy should be used.
    """
    if len(shape) < 2:
        return [None]      # 0-D/1-D: one contiguous DMA, never split lanes
    lead = int(shape[0])
    row_elems = 1
    for d in shape[1:]:
        row_elems *= int(d)
    total_bytes = lead * row_elems * jnp.dtype(dtype).itemsize
    if total_bytes < _CHUNK_THRESHOLD_BYTES:
        return [None]
    # Axis-0 split alignment: for 2-D arrays axis 0 is the sublane dim of the
    # (8,128)-tiled HBM layout, so split on 32-row boundaries (covers int8's
    # 32-row sublane packing); for >=3-D the tiled trailing dims are wholly
    # contained per leading index, so any split is tile-aligned.
    align = 32 if len(shape) == 2 else 1
    n = min(_MAX_INFLIGHT_DMAS, lead // align)
    if n <= 1:
        return [None]
    chunk = -(-lead // n)                  # ceil(lead / n)
    chunk = -(-chunk // align) * align     # round up to the alignment
    bounds = []
    start = 0
    while start < lead:
        size = min(chunk, lead - start)
        bounds.append((start, size))
        start += size
    return bounds


def _make_hbm_copy_kernel(bounds):
    """Kernel issuing one HBM->HBM async copy per (static) chunk."""

    def kernel(x_ref, o_ref, sems):
        copies = []
        for idx, b in enumerate(bounds):     # static Python unroll
            if b is None:
                src, dst = x_ref, o_ref
            else:
                start, size = b
                src = x_ref.at[pl.ds(start, size)]
                dst = o_ref.at[pl.ds(start, size)]
            cp = pltpu.make_async_copy(src, dst, sems.at[idx])
            cp.start()
            copies.append(cp)
        for cp in copies:                    # all issued first, then wait
            cp.wait()

    return kernel


def identity(x: jax.Array, *, use_kernel: bool = True) -> jax.Array:
    """Pallas implementation of Identity.forward: returns the input unchanged.

    use_kernel=False returns `x` directly (the optimal identity: zero HBM
    traffic).  use_kernel=True (default) performs the copy as chunked
    HBM->HBM async DMAs with no VMEM staging and no grid.
    """
    if not use_kernel or x.size == 0:
        return x

    orig_ndim = x.ndim
    xk = x.reshape((1,)) if orig_ndim == 0 else x   # DMA needs >=1-D ref

    bounds = _chunk_bounds(xk.shape, xk.dtype)
    y = pl.pallas_call(
        _make_hbm_copy_kernel(bounds),
        out_shape=jax.ShapeDtypeStruct(xk.shape, xk.dtype),
        in_specs=[pl.BlockSpec(memory_space=pl.ANY)],    # input stays in HBM
        out_specs=pl.BlockSpec(memory_space=pl.ANY),     # output stays in HBM
        scratch_shapes=[pltpu.SemaphoreType.DMA((len(bounds),))],
    )(xk)

    return y.reshape(x.shape) if orig_ndim == 0 else y


if __name__ == "__main__":
    key = jax.random.PRNGKey(0)
    # Small NCHW input consistent with a typical vision forward.
    x = jax.random.normal(key, (2, 4, 16, 16), dtype=jnp.float32)

    y = identity(x)
    jax.block_until_ready(y)

    assert y.shape == x.shape
    assert y.dtype == x.dtype
    assert bool(jnp.all(y == x))
    print("KERNEL_OK")
</pallas_src>

<mosaic_0001>
module attributes {stable_mosaic.version = 11 : i64} {
  func.func @kernel(%arg0: memref<2x4x16x16xf32, #tpu.memory_space<any>>, %arg1: memref<2x4x16x16xf32, #tpu.memory_space<any>>, %arg2: memref<1x!tpu.dma_semaphore, #tpu.memory_space<semaphore_mem>>) attributes {dimension_semantics = [], scalar_prefetch = 0 : i64, scratch_operands = 1 : i64, tpu.core_type = #tpu.core_type<tc>} {
    %c0_i32 = arith.constant 0 : i32
    %0 = tpu.memref_slice %arg2[%c0_i32] : memref<1x!tpu.dma_semaphore, #tpu.memory_space<semaphore_mem>> -> memref<1x!tpu.dma_semaphore, #tpu.memory_space<semaphore_mem>>
    %1 = tpu.memref_squeeze %0 : memref<1x!tpu.dma_semaphore, #tpu.memory_space<semaphore_mem>> -> memref<!tpu.dma_semaphore, #tpu.memory_space<semaphore_mem>>
    tpu.enqueue_dma source(%arg0 : memref<2x4x16x16xf32, #tpu.memory_space<any>>) target(%arg1 : memref<2x4x16x16xf32, #tpu.memory_space<any>>) target_semaphore(%1 : memref<!tpu.dma_semaphore, #tpu.memory_space<semaphore_mem>>)
    %c0_i32_0 = arith.constant 0 : i32
    %2 = tpu.memref_slice %arg2[%c0_i32_0] : memref<1x!tpu.dma_semaphore, #tpu.memory_space<semaphore_mem>> -> memref<1x!tpu.dma_semaphore, #tpu.memory_space<semaphore_mem>>
    %3 = tpu.memref_squeeze %2 : memref<1x!tpu.dma_semaphore, #tpu.memory_space<semaphore_mem>> -> memref<!tpu.dma_semaphore, #tpu.memory_space<semaphore_mem>>
    tpu.wait_dma2 semaphore(%3 : memref<!tpu.dma_semaphore, #tpu.memory_space<semaphore_mem>>) src(%arg0 : memref<2x4x16x16xf32, #tpu.memory_space<any>>) dst(%arg1 : memref<2x4x16x16xf32, #tpu.memory_space<any>>)
    return
  }
}

</mosaic_0001>

<llo_original>
// kernel: tpu_custom_call.1
$region0: #{tpu_custom_call.1}
  #allocation0 [shape = 'u32[]', space=smem, size = 0x4, offset = 0x4, fixed_abs, tag = 'smem constant byte address 0x4 - core index']
  #allocation1 [shape = 'u32[144,128]{1,0:T(1,128)}', space=vmem, size = 0x12000, scoped, tag = 'internal scratch']
  #allocation2 [shape = 's32[1]{0}', space=sflag, size = 0x4, scoped, tag = 'scratch operand']
  #allocation3 [shape = 's32[]', space=sflag, size = 0x4, offset = 0, fixed_abs, tag = 'sflag constant byte address 0x0 - dummy sync flag']
  #allocation4 [shape = 'u32[0]{0}', space=smem, size = 0, offset = 0, fixed_abs, tag = 'smem constant byte address 0x0 - null']
  %s0 = inlined_call_operand.hbm [shape: f32[2,4,16,16], index: 0, kind: input, shape index: {}]
  %s1 = inlined_call_operand.hbm [shape: f32[2,4,16,16], index: 1, kind: output, shape index: {}]
  %s2 = sld [smem:[#allocation0]]
  $region2: #{tpu_custom_call.1} parent=0
    _
  %s4 = ssub.s32 1, %s2
  %s5 = scalar_select 0, %s4, %s2
  %s7 = sshll.u32 1, 14
  %s8 = sxor.u32 4294967295, %s7
  %s11 = sshll.u32 3, 24
  %s12 = sxor.u32 4294967295, %s11
  %s13 = sand.u32 0, %s12
  %s15 = sor.u32 %s13, 0
  %18 = dma.general %s0, 2048, %s1, [#allocation2], [#allocation3], [#allocation4], %s15, 0
  %s19 = smul.u32 2, 4
  %s20 = smul.u32 %s19, 16
  %s21 = smul.u32 %s20, 1
  %s22 = sshll.u32 %s21, 4
  %23 = dma.done [#allocation2], %s22
  %24 = vsyncmov [#allocation2]
  %s25 = vpop.sfrf %24
  %p26 = scmp.eq.s32.totalorder %s25, 0
  %p27 = pneg %p26
  %29 = shalt.err (%p27)

</llo_original>
